<compile_context>
chip_gen: v7x
topology: tpu7x:2x2x1
jax: 0.10.0
libtpu: 0.0.40
codegen_flags: <defaults>
</compile_context>

<pallas_src>
import functools

import jax
import jax.numpy as jnp
from jax.experimental import pallas as pl
from jax.experimental.pallas import tpu as pltpu


def add_kernel(a_ref, b_ref, o_ref):
    o_ref[...] = a_ref[...] + b_ref[...]


def _tensorcores_per_chip() -> int:
    """Best-effort number of TensorCores per chip (2 on v7x, 1 on v5e/v6e)."""
    # Try the trace-time hardware query first.
    try:
        info = pltpu.get_tpu_info()
        for attr in ("num_cores", "num_tensorcores", "tensorcores_per_chip",
                     "cores_per_chip"):
            n = getattr(info, attr, None)
            if n:
                return min(int(n), 2)
    except Exception:
        pass
    # Fall back to parsing the device kind string (e.g. "TPU7x").
    try:
        kind = jax.devices()[0].device_kind.lower()
        if "7" in kind:
            return 2
    except Exception:
        pass
    return 1


def _choose_num_blocks(n_rows: int) -> int:
    """2-way row split only when there are 2 TCs and the split stays (8,·)-aligned."""
    cores = _tensorcores_per_chip()
    if cores >= 2 and n_rows % 2 == 0 and (n_rows // 2) % 8 == 0:
        return 2
    return 1


@functools.partial(jax.jit, static_argnames=("num_blocks",))
def pallas_add(a, b, *, num_blocks: int = 1):
    assert a.shape == b.shape and a.dtype == b.dtype
    orig_shape = a.shape
    N, C, H, W = orig_shape

    # Lane-dense 2-D view: rows = N*C, cols = H*W (>=128 lanes per row).
    # Under jit these reshapes are pure layout metadata (no copies).
    R, L = N * C, H * W
    a2 = a.reshape(R, L)
    b2 = b.reshape(R, L)

    if R % num_blocks != 0 or (R // num_blocks) % 8 != 0:
        num_blocks = 1
    rows = R // num_blocks

    nelems = R * L
    itemsize = jnp.dtype(a.dtype).itemsize

    # rows is a multiple of 8; L (=196) equals the full array dim, so the
    # block shape is legal without padding the lane axis to 128.
    spec = pl.BlockSpec((rows, L), lambda i: (i, 0))

    out2 = pl.pallas_call(
        add_kernel,
        out_shape=jax.ShapeDtypeStruct((R, L), a.dtype),
        grid=(num_blocks,),
        in_specs=[spec, spec],
        out_specs=spec,
        compiler_params=pltpu.CompilerParams(
            dimension_semantics=("parallel",),
        ),
        cost_estimate=pl.CostEstimate(
            flops=nelems,
            transcendentals=0,
            bytes_accessed=3 * nelems * itemsize,
        ),
    )(a2, b2)

    return out2.reshape(orig_shape)


if __name__ == "__main__":
    key = jax.random.PRNGKey(0)
    k1, k2 = jax.random.split(key)
    # Shapes implied by the module's forward: [1, 720, 14, 14]
    x149 = jax.random.normal(k1, (1, 720, 14, 14), dtype=jnp.float32)
    x157 = jax.random.normal(k2, (1, 720, 14, 14), dtype=jnp.float32)

    num_blocks = _choose_num_blocks(x149.shape[0] * x149.shape[1])
    out = pallas_add(x149, x157, num_blocks=num_blocks)
    jax.block_until_ready(out)

    # correctness check against plain JAX reference
    ref = x149 + x157
    assert out.shape == (1, 720, 14, 14)
    assert out.dtype == jnp.float32
    assert jnp.allclose(out, ref, atol=1e-6, rtol=1e-6)

    print("KERNEL_OK")
</pallas_src>

<mosaic_0001>
module attributes {stable_mosaic.version = 11 : i64} {
  func.func @add_kernel(%arg0: i32, %arg1: memref<720x196xf32, #tpu.memory_space<vmem>>, %arg2: memref<720x196xf32, #tpu.memory_space<vmem>>, %arg3: memref<720x196xf32, #tpu.memory_space<vmem>>) attributes {dimension_semantics = [#tpu.dimension_semantics<parallel>], iteration_bounds = array<i64: 1>, scalar_prefetch = 0 : i64, scratch_operands = 0 : i64, tpu.core_type = #tpu.core_type<tc>, window_params = [{transform_indices = @transform_0, window_bounds = array<i64: 720, 196>}, {transform_indices = @transform_1, window_bounds = array<i64: 720, 196>}, {transform_indices = @transform_2, window_bounds = array<i64: 720, 196>}]} {
    %c0 = arith.constant 0 : index
    %c0_0 = arith.constant 0 : index
    %0 = vector.load %arg1[%c0, %c0_0] : memref<720x196xf32, #tpu.memory_space<vmem>>, vector<720x196xf32>
    %c0_1 = arith.constant 0 : index
    %c0_2 = arith.constant 0 : index
    %1 = vector.load %arg2[%c0_1, %c0_2] : memref<720x196xf32, #tpu.memory_space<vmem>>, vector<720x196xf32>
    %2 = arith.addf %0, %1 : vector<720x196xf32>
    %c0_3 = arith.constant 0 : index
    %c0_4 = arith.constant 0 : index
    %3 = vector.load %arg3[%c0_3, %c0_4] : memref<720x196xf32, #tpu.memory_space<vmem>>, vector<720x196xf32>
    tpu.vector_store %arg3[%c0_3, %c0_4], %2 {strides = array<i32>} : memref<720x196xf32, #tpu.memory_space<vmem>>, vector<720x196xf32>,
    return
  }
  func.func @transform_0(%arg0: i32) -> (i32, i32) {
    %c0_i32 = arith.constant 0 : i32
    %c0_i32_0 = arith.constant 0 : i32
    return %arg0, %c0_i32 : i32, i32
  }
  func.func @transform_1(%arg0: i32) -> (i32, i32) {
    %c0_i32 = arith.constant 0 : i32
    %c0_i32_0 = arith.constant 0 : i32
    return %arg0, %c0_i32 : i32, i32
  }
  func.func @transform_2(%arg0: i32) -> (i32, i32) {
    %c0_i32 = arith.constant 0 : i32
    %c0_i32_0 = arith.constant 0 : i32
    return %arg0, %c0_i32 : i32, i32
  }
}

</mosaic_0001>

<llo_original>
// kernel: pallas_add.1
$region0: #{pallas_add.1}
  #allocation0 [shape = 'u32[]', space=smem, size = 0x4, offset = 0x4, fixed_abs, tag = 'smem constant byte address 0x4 - core index']
  #allocation1 [shape = 'u32[144,128]{1,0:T(1,128)}', space=vmem, size = 0x12000, scoped, tag = 'internal scratch']
  %s0 = inlined_call_operand.vmem [shape: f32[720,196], index: 0, kind: input, shape index: {}]
  %s1 = inlined_call_operand.vmem [shape: f32[720,196], index: 1, kind: input, shape index: {}]
  %s2 = inlined_call_operand.vmem [shape: f32[720,196], index: 2, kind: output, shape index: {}]
  %s3 = sld [smem:[#allocation0]]
  $region18: #{pallas_add.1} parent=0
    _
  %s5 = ssub.s32 1, %s3
  %s6 = scalar_select 0, %s5, %s3
  // Predicated region
  $region2: #{pallas_add.1} parent=0 // pred_check
    _
  $region3: #{pallas_add.1} parent=0 // pred_check_branch
    %8 = sbr.rel (0) target = $region5
  $region4: #{pallas_add.1} parent=0 // pred_region
    _
  $region5: #{pallas_add.1} parent=0 // pred_fallthru
    _
  // Predicated region
  $region6: #{pallas_add.1} parent=0 // pred_check
    _
  $region7: #{pallas_add.1} parent=0 // pred_check_branch
    %10 = sbr.rel (0) target = $region9
  $region8: #{pallas_add.1} parent=0 // pred_region
    _
  $region9: #{pallas_add.1} parent=0 // pred_fallthru
    _
  %v11 = vld [vmem:[%s0] sm:$0xff]
  %v12 = vld [vmem:[%s0 + $0x8] sm:$0xff]
  %v13 = vld [vmem:[%s0 + $0x10] sm:$0xff]
  %v14 = vld [vmem:[%s0 + $0x18] sm:$0xff]
  %v15 = vld [vmem:[%s0 + $0x20] sm:$0xff]
  %v16 = vld [vmem:[%s0 + $0x28] sm:$0xff]
  %v17 = vld [vmem:[%s0 + $0x30] sm:$0xff]
  %v18 = vld [vmem:[%s0 + $0x38] sm:$0xff]
  %v19 = vld [vmem:[%s0 + $0x40] sm:$0xff]
  %v20 = vld [vmem:[%s0 + $0x48] sm:$0xff]
  %v21 = vld [vmem:[%s0 + $0x50] sm:$0xff]
  %v22 = vld [vmem:[%s0 + $0x58] sm:$0xff]
  %v23 = vld [vmem:[%s0 + $0x60] sm:$0xff]
  %v24 = vld [vmem:[%s0 + $0x68] sm:$0xff]
  %v25 = vld [vmem:[%s0 + $0x70] sm:$0xff]
  %v26 = vld [vmem:[%s0 + $0x78] sm:$0xff]
  %v27 = vld [vmem:[%s0 + $0x80] sm:$0xff]
  %v28 = vld [vmem:[%s0 + $0x88] sm:$0xff]
  %v29 = vld [vmem:[%s0 + $0x90] sm:$0xff]
  %v30 = vld [vmem:[%s0 + $0x98] sm:$0xff]
  %v31 = vld [vmem:[%s0 + $0xa0] sm:$0xff]
  %v32 = vld [vmem:[%s0 + $0xa8] sm:$0xff]
  %v33 = vld [vmem:[%s0 + $0xb0] sm:$0xff]
  %v34 = vld [vmem:[%s0 + $0xb8] sm:$0xff]
  %v35 = vld [vmem:[%s0 + $0xc0] sm:$0xff]
  %v36 = vld [vmem:[%s0 + $0xc8] sm:$0xff]
  %v37 = vld [vmem:[%s0 + $0xd0] sm:$0xff]
  %v38 = vld [vmem:[%s0 + $0xd8] sm:$0xff]
  %v39 = vld [vmem:[%s0 + $0xe0] sm:$0xff]
  %v40 = vld [vmem:[%s0 + $0xe8] sm:$0xff]
  %v41 = vld [vmem:[%s0 + $0xf0] sm:$0xff]
  %v42 = vld [vmem:[%s0 + $0xf8] sm:$0xff]
  %v43 = vld [vmem:[%s0 + $0x100] sm:$0xff]
  %v44 = vld [vmem:[%s0 + $0x108] sm:$0xff]
  %v45 = vld [vmem:[%s0 + $0x110] sm:$0xff]
  %v46 = vld [vmem:[%s0 + $0x118] sm:$0xff]
  %v47 = vld [vmem:[%s0 + $0x120] sm:$0xff]
  %v48 = vld [vmem:[%s0 + $0x128] sm:$0xff]
  %v49 = vld [vmem:[%s0 + $0x130] sm:$0xff]
  %v50 = vld [vmem:[%s0 + $0x138] sm:$0xff]
  %v51 = vld [vmem:[%s0 + $0x140] sm:$0xff]
  %v52 = vld [vmem:[%s0 + $0x148] sm:$0xff]
  %v53 = vld [vmem:[%s0 + $0x150] sm:$0xff]
  %v54 = vld [vmem:[%s0 + $0x158] sm:$0xff]
  %v55 = vld [vmem:[%s0 + $0x160] sm:$0xff]
  %v56 = vld [vmem:[%s0 + $0x168] sm:$0xff]
  %v57 = vld [vmem:[%s0 + $0x170] sm:$0xff]
  %v58 = vld [vmem:[%s0 + $0x178] sm:$0xff]
  %v59 = vld [vmem:[%s0 + $0x180] sm:$0xff]
  %v60 = vld [vmem:[%s0 + $0x188] sm:$0xff]
  %v61 = vld [vmem:[%s0 + $0x190] sm:$0xff]
  %v62 = vld [vmem:[%s0 + $0x198] sm:$0xff]
  %v63 = vld [vmem:[%s0 + $0x1a0] sm:$0xff]
  %v64 = vld [vmem:[%s0 + $0x1a8] sm:$0xff]
  %v65 = vld [vmem:[%s0 + $0x1b0] sm:$0xff]
  %v66 = vld [vmem:[%s0 + $0x1b8] sm:$0xff]
  %v67 = vld [vmem:[%s0 + $0x1c0] sm:$0xff]
  %v68 = vld [vmem:[%s0 + $0x1c8] sm:$0xff]
  %v69 = vld [vmem:[%s0 + $0x1d0] sm:$0xff]
  %v70 = vld [vmem:[%s0 + $0x1d8] sm:$0xff]
  %v71 = vld [vmem:[%s0 + $0x1e0] sm:$0xff]
  %v72 = vld [vmem:[%s0 + $0x1e8] sm:$0xff]
  %v73 = vld [vmem:[%s0 + $0x1f0] sm:$0xff]
  %v74 = vld [vmem:[%s0 + $0x1f8] sm:$0xff]
  %v75 = vld [vmem:[%s0 + $0x200] sm:$0xff]
  %v76 = vld [vmem:[%s0 + $0x208] sm:$0xff]
  %v77 = vld [vmem:[%s0 + $0x210] sm:$0xff]
  %v78 = vld [vmem:[%s0 + $0x218] sm:$0xff]
  %v79 = vld [vmem:[%s0 + $0x220] sm:$0xff]
  %v80 = vld [vmem:[%s0 + $0x228] sm:$0xff]
  %v81 = vld [vmem:[%s0 + $0x230] sm:$0xff]
  %v82 = vld [vmem:[%s0 + $0x238] sm:$0xff]
  %v83 = vld [vmem:[%s0 + $0x240] sm:$0xff]
  %v84 = vld [vmem:[%s0 + $0x248] sm:$0xff]
  %v85 = vld [vmem:[%s0 + $0x250] sm:$0xff]
  %v86 = vld [vmem:[%s0 + $0x258] sm:$0xff]
  %v87 = vld [vmem:[%s0 + $0x260] sm:$0xff]
  %v88 = vld [vmem:[%s0 + $0x268] sm:$0xff]
  %v89 = vld [vmem:[%s0 + $0x270] sm:$0xff]
  %v90 = vld [vmem:[%s0 + $0x278] sm:$0xff]
  %v91 = vld [vmem:[%s0 + $0x280] sm:$0xff]
  %v92 = vld [vmem:[%s0 + $0x288] sm:$0xff]
  %v93 = vld [vmem:[%s0 + $0x290] sm:$0xff]
  %v94 = vld [vmem:[%s0 + $0x298] sm:$0xff]
  %v95 = vld [vmem:[%s0 + $0x2a0] sm:$0xff]
  %v96 = vld [vmem:[%s0 + $0x2a8] sm:$0xff]
  %v97 = vld [vmem:[%s0 + $0x2b0] sm:$0xff]
  %v98 = vld [vmem:[%s0 + $0x2b8] sm:$0xff]
  %v99 = vld [vmem:[%s0 + $0x2c0] sm:$0xff]
  %v100 = vld [vmem:[%s0 + $0x2c8] sm:$0xff]
  %v101 = vld [vmem:[%s0 + $0x2d0] sm:$0xff]
  %v102 = vld [vmem:[%s0 + $0x2d8] sm:$0xff]
  %v103 = vld [vmem:[%s0 + $0x2e0] sm:$0xff]
  %v104 = vld [vmem:[%s0 + $0x2e8] sm:$0xff]
  %v105 = vld [vmem:[%s0 + $0x2f0] sm:$0xff]
  %v106 = vld [vmem:[%s0 + $0x2f8] sm:$0xff]
  %v107 = vld [vmem:[%s0 + $0x300] sm:$0xff]
  %v108 = vld [vmem:[%s0 + $0x308] sm:$0xff]
  %v109 = vld [vmem:[%s0 + $0x310] sm:$0xff]
  %v110 = vld [vmem:[%s0 + $0x318] sm:$0xff]
  %v111 = vld [vmem:[%s0 + $0x320] sm:$0xff]
  %v112 = vld [vmem:[%s0 + $0x328] sm:$0xff]
  %v113 = vld [vmem:[%s0 + $0x330] sm:$0xff]
  %v114 = vld [vmem:[%s0 + $0x338] sm:$0xff]
  %v115 = vld [vmem:[%s0 + $0x340] sm:$0xff]
  %v116 = vld [vmem:[%s0 + $0x348] sm:$0xff]
  %v117 = vld [vmem:[%s0 + $0x350] sm:$0xff]
  %v118 = vld [vmem:[%s0 + $0x358] sm:$0xff]
  %v119 = vld [vmem:[%s0 + $0x360] sm:$0xff]
  %v120 = vld [vmem:[%s0 + $0x368] sm:$0xff]
  %v121 = vld [vmem:[%s0 + $0x370] sm:$0xff]
  %v122 = vld [vmem:[%s0 + $0x378] sm:$0xff]
  %v123 = vld [vmem:[%s0 + $0x380] sm:$0xff]
  %v124 = vld [vmem:[%s0 + $0x388] sm:$0xff]
  %v125 = vld [vmem:[%s0 + $0x390] sm:$0xff]
  %v126 = vld [vmem:[%s0 + $0x398] sm:$0xff]
  %v127 = vld [vmem:[%s0 + $0x3a0] sm:$0xff]
  %v128 = vld [vmem:[%s0 + $0x3a8] sm:$0xff]
  %v129 = vld [vmem:[%s0 + $0x3b0] sm:$0xff]
  %v130 = vld [vmem:[%s0 + $0x3b8] sm:$0xff]
  %v131 = vld [vmem:[%s0 + $0x3c0] sm:$0xff]
  %v132 = vld [vmem:[%s0 + $0x3c8] sm:$0xff]
  %v133 = vld [vmem:[%s0 + $0x3d0] sm:$0xff]
  %v134 = vld [vmem:[%s0 + $0x3d8] sm:$0xff]
  %v135 = vld [vmem:[%s0 + $0x3e0] sm:$0xff]
  %v136 = vld [vmem:[%s0 + $0x3e8] sm:$0xff]
  %v137 = vld [vmem:[%s0 + $0x3f0] sm:$0xff]
  %v138 = vld [vmem:[%s0 + $0x3f8] sm:$0xff]
  %v139 = vld [vmem:[%s0 + $0x400] sm:$0xff]
  %v140 = vld [vmem:[%s0 + $0x408] sm:$0xff]
  %v141 = vld [vmem:[%s0 + $0x410] sm:$0xff]
  %v142 = vld [vmem:[%s0 + $0x418] sm:$0xff]
  %v143 = vld [vmem:[%s0 + $0x420] sm:$0xff]
  %v144 = vld [vmem:[%s0 + $0x428] sm:$0xff]
  %v145 = vld [vmem:[%s0 + $0x430] sm:$0xff]
  %v146 = vld [vmem:[%s0 + $0x438] sm:$0xff]
  %v147 = vld [vmem:[%s0 + $0x440] sm:$0xff]
  %v148 = vld [vmem:[%s0 + $0x448] sm:$0xff]
  %v149 = vld [vmem:[%s0 + $0x450] sm:$0xff]
  %v150 = vld [vmem:[%s0 + $0x458] sm:$0xff]
  %v151 = vld [vmem:[%s0 + $0x460] sm:$0xff]
  %v152 = vld [vmem:[%s0 + $0x468] sm:$0xff]
  %v153 = vld [vmem:[%s0 + $0x470] sm:$0xff]
  %v154 = vld [vmem:[%s0 + $0x478] sm:$0xff]
  %v155 = vld [vmem:[%s0 + $0x480] sm:$0xff]
  %v156 = vld [vmem:[%s0 + $0x488] sm:$0xff]
  %v157 = vld [vmem:[%s0 + $0x490] sm:$0xff]
  %v158 = vld [vmem:[%s0 + $0x498] sm:$0xff]
  %v159 = vld [vmem:[%s0 + $0x4a0] sm:$0xff]
  %v160 = vld [vmem:[%s0 + $0x4a8] sm:$0xff]
  %v161 = vld [vmem:[%s0 + $0x4b0] sm:$0xff]
  %v162 = vld [vmem:[%s0 + $0x4b8] sm:$0xff]
  %v163 = vld [vmem:[%s0 + $0x4c0] sm:$0xff]
  %v164 = vld [vmem:[%s0 + $0x4c8] sm:$0xff]
  %v165 = vld [vmem:[%s0 + $0x4d0] sm:$0xff]
  %v166 = vld [vmem:[%s0 + $0x4d8] sm:$0xff]
  %v167 = vld [vmem:[%s0 + $0x4e0] sm:$0xff]
  %v168 = vld [vmem:[%s0 + $0x4e8] sm:$0xff]
  %v169 = vld [vmem:[%s0 + $0x4f0] sm:$0xff]
  %v170 = vld [vmem:[%s0 + $0x4f8] sm:$0xff]
  %v171 = vld [vmem:[%s0 + $0x500] sm:$0xff]
  %v172 = vld [vmem:[%s0 + $0x508] sm:$0xff]
  %v173 = vld [vmem:[%s0 + $0x510] sm:$0xff]
  %v174 = vld [vmem:[%s0 + $0x518] sm:$0xff]
  %v175 = vld [vmem:[%s0 + $0x520] sm:$0xff]
  %v176 = vld [vmem:[%s0 + $0x528] sm:$0xff]
  %v177 = vld [vmem:[%s0 + $0x530] sm:$0xff]
  %v178 = vld [vmem:[%s0 + $0x538] sm:$0xff]
  %v179 = vld [vmem:[%s0 + $0x540] sm:$0xff]
  %v180 = vld [vmem:[%s0 + $0x548] sm:$0xff]
  %v181 = vld [vmem:[%s0 + $0x550] sm:$0xff]
  %v182 = vld [vmem:[%s0 + $0x558] sm:$0xff]
  %v183 = vld [vmem:[%s0 + $0x560] sm:$0xff]
  %v184 = vld [vmem:[%s0 + $0x568] sm:$0xff]
  %v185 = vld [vmem:[%s0 + $0x570] sm:$0xff]
  %v186 = vld [vmem:[%s0 + $0x578] sm:$0xff]
  %v187 = vld [vmem:[%s0 + $0x580] sm:$0xff]
  %v188 = vld [vmem:[%s0 + $0x588] sm:$0xff]
  %v189 = vld [vmem:[%s0 + $0x590] sm:$0xff]
  %v190 = vld [vmem:[%s0 + $0x598] sm:$0xff]
  %v191 = vld [vmem:[%s1] sm:$0xff]
  %v192 = vld [vmem:[%s1 + $0x8] sm:$0xff]
  %v193 = vld [vmem:[%s1 + $0x10] sm:$0xff]
  %v194 = vld [vmem:[%s1 + $0x18] sm:$0xff]
  %v195 = vld [vmem:[%s1 + $0x20] sm:$0xff]
  %v196 = vld [vmem:[%s1 + $0x28] sm:$0xff]
  %v197 = vld [vmem:[%s1 + $0x30] sm:$0xff]
  %v198 = vld [vmem:[%s1 + $0x38] sm:$0xff]
  %v199 = vld [vmem:[%s1 + $0x40] sm:$0xff]
  %v200 = vld [vmem:[%s1 + $0x48] sm:$0xff]
  %v201 = vld [vmem:[%s1 + $0x50] sm:$0xff]
  %v202 = vld [vmem:[%s1 + $0x58] sm:$0xff]
  %v203 = vld [vmem:[%s1 + $0x60] sm:$0xff]
  %v204 = vld [vmem:[%s1 + $0x68] sm:$0xff]
  %v205 = vld [vmem:[%s1 + $0x70] sm:$0xff]
  %v206 = vld [vmem:[%s1 + $0x78] sm:$0xff]
  %v207 = vld [vmem:[%s1 + $0x80] sm:$0xff]
  %v208 = vld [vmem:[%s1 + $0x88] sm:$0xff]
  %v209 = vld [vmem:[%s1 + $0x90] sm:$0xff]
  %v210 = vld [vmem:[%s1 + $0x98] sm:$0xff]
  %v211 = vld [vmem:[%s1 + $0xa0] sm:$0xff]
  %v212 = vld [vmem:[%s1 + $0xa8] sm:$0xff]
  %v213 = vld [vmem:[%s1 + $0xb0] sm:$0xff]
  %v214 = vld [vmem:[%s1 + $0xb8] sm:$0xff]
  %v215 = vld [vmem:[%s1 + $0xc0] sm:$0xff]
  %v216 = vld [vmem:[%s1 + $0xc8] sm:$0xff]
  %v217 = vld [vmem:[%s1 + $0xd0] sm:$0xff]
  %v218 = vld [vmem:[%s1 + $0xd8] sm:$0xff]
  %v219 = vld [vmem:[%s1 + $0xe0] sm:$0xff]
  %v220 = vld [vmem:[%s1 + $0xe8] sm:$0xff]
  %v221 = vld [vmem:[%s1 + $0xf0] sm:$0xff]
  %v222 = vld [vmem:[%s1 + $0xf8] sm:$0xff]
  %v223 = vld [vmem:[%s1 + $0x100] sm:$0xff]
  %v224 = vld [vmem:[%s1 + $0x108] sm:$0xff]
  %v225 = vld [vmem:[%s1 + $0x110] sm:$0xff]
  %v226 = vld [vmem:[%s1 + $0x118] sm:$0xff]
  %v227 = vld [vmem:[%s1 + $0x120] sm:$0xff]
  %v228 = vld [vmem:[%s1 + $0x128] sm:$0xff]
  %v229 = vld [vmem:[%s1 + $0x130] sm:$0xff]
  %v230 = vld [vmem:[%s1 + $0x138] sm:$0xff]
  %v231 = vld [vmem:[%s1 + $0x140] sm:$0xff]
  %v232 = vld [vmem:[%s1 + $0x148] sm:$0xff]
  %v233 = vld [vmem:[%s1 + $0x150] sm:$0xff]
  %v234 = vld [vmem:[%s1 + $0x158] sm:$0xff]
  %v235 = vld [vmem:[%s1 + $0x160] sm:$0xff]
  %v236 = vld [vmem:[%s1 + $0x168] sm:$0xff]
  %v237 = vld [vmem:[%s1 + $0x170] sm:$0xff]
  %v238 = vld [vmem:[%s1 + $0x178] sm:$0xff]
  %v239 = vld [vmem:[%s1 + $0x180] sm:$0xff]
  %v240 = vld [vmem:[%s1 + $0x188] sm:$0xff]
  %v241 = vld [vmem:[%s1 + $0x190] sm:$0xff]
  %v242 = vld [vmem:[%s1 + $0x198] sm:$0xff]
  %v243 = vld [vmem:[%s1 + $0x1a0] sm:$0xff]
  %v244 = vld [vmem:[%s1 + $0x1a8] sm:$0xff]
  %v245 = vld [vmem:[%s1 + $0x1b0] sm:$0xff]
  %v246 = vld [vmem:[%s1 + $0x1b8] sm:$0xff]
  %v247 = vld [vmem:[%s1 + $0x1c0] sm:$0xff]
  %v248 = vld [vmem:[%s1 + $0x1c8] sm:$0xff]
  %v249 = vld [vmem:[%s1 + $0x1d0] sm:$0xff]
  %v250 = vld [vmem:[%s1 + $0x1d8] sm:$0xff]
  %v251 = vld [vmem:[%s1 + $0x1e0] sm:$0xff]
  %v252 = vld [vmem:[%s1 + $0x1e8] sm:$0xff]
  %v253 = vld [vmem:[%s1 + $0x1f0] sm:$0xff]
  %v254 = vld [vmem:[%s1 + $0x1f8] sm:$0xff]
  %v255 = vld [vmem:[%s1 + $0x200] sm:$0xff]
  %v256 = vld [vmem:[%s1 + $0x208] sm:$0xff]
  %v257 = vld [vmem:[%s1 + $0x210] sm:$0xff]
  %v258 = vld [vmem:[%s1 + $0x218] sm:$0xff]
  %v259 = vld [vmem:[%s1 + $0x220] sm:$0xff]
  %v260 = vld [vmem:[%s1 + $0x228] sm:$0xff]
  %v261 = vld [vmem:[%s1 + $0x230] sm:$0xff]
  %v262 = vld [vmem:[%s1 + $0x238] sm:$0xff]
  %v263 = vld [vmem:[%s1 + $0x240] sm:$0xff]
  %v264 = vld [vmem:[%s1 + $0x248] sm:$0xff]
  %v265 = vld [vmem:[%s1 + $0x250] sm:$0xff]
  %v266 = vld [vmem:[%s1 + $0x258] sm:$0xff]
  %v267 = vld [vmem:[%s1 + $0x260] sm:$0xff]
  %v268 = vld [vmem:[%s1 + $0x268] sm:$0xff]
  %v269 = vld [vmem:[%s1 + $0x270] sm:$0xff]
  %v270 = vld [vmem:[%s1 + $0x278] sm:$0xff]
  %v271 = vld [vmem:[%s1 + $0x280] sm:$0xff]
  %v272 = vld [vmem:[%s1 + $0x288] sm:$0xff]
  %v273 = vld [vmem:[%s1 + $0x290] sm:$0xff]
  %v274 = vld [vmem:[%s1 + $0x298] sm:$0xff]
  %v275 = vld [vmem:[%s1 + $0x2a0] sm:$0xff]
  %v276 = vld [vmem:[%s1 + $0x2a8] sm:$0xff]
  %v277 = vld [vmem:[%s1 + $0x2b0] sm:$0xff]
  %v278 = vld [vmem:[%s1 + $0x2b8] sm:$0xff]
  %v279 = vld [vmem:[%s1 + $0x2c0] sm:$0xff]
  %v280 = vld [vmem:[%s1 + $0x2c8] sm:$0xff]
  %v281 = vld [vmem:[%s1 + $0x2d0] sm:$0xff]
  %v282 = vld [vmem:[%s1 + $0x2d8] sm:$0xff]
  %v283 = vld [vmem:[%s1 + $0x2e0] sm:$0xff]
  %v284 = vld [vmem:[%s1 + $0x2e8] sm:$0xff]
  %v285 = vld [vmem:[%s1 + $0x2f0] sm:$0xff]
  %v286 = vld [vmem:[%s1 + $0x2f8] sm:$0xff]
  %v287 = vld [vmem:[%s1 + $0x300] sm:$0xff]
  %v288 = vld [vmem:[%s1 + $0x308] sm:$0xff]
  %v289 = vld [vmem:[%s1 + $0x310] sm:$0xff]
  %v290 = vld [vmem:[%s1 + $0x318] sm:$0xff]
  %v291 = vld [vmem:[%s1 + $0x320] sm:$0xff]
  %v292 = vld [vmem:[%s1 + $0x328] sm:$0xff]
  %v293 = vld [vmem:[%s1 + $0x330] sm:$0xff]
  %v294 = vld [vmem:[%s1 + $0x338] sm:$0xff]
  %v295 = vld [vmem:[%s1 + $0x340] sm:$0xff]
  %v296 = vld [vmem:[%s1 + $0x348] sm:$0xff]
  %v297 = vld [vmem:[%s1 + $0x350] sm:$0xff]
  %v298 = vld [vmem:[%s1 + $0x358] sm:$0xff]
  %v299 = vld [vmem:[%s1 + $0x360] sm:$0xff]
  %v300 = vld [vmem:[%s1 + $0x368] sm:$0xff]
  %v301 = vld [vmem:[%s1 + $0x370] sm:$0xff]
  %v302 = vld [vmem:[%s1 + $0x378] sm:$0xff]
  %v303 = vld [vmem:[%s1 + $0x380] sm:$0xff]
  %v304 = vld [vmem:[%s1 + $0x388] sm:$0xff]
  %v305 = vld [vmem:[%s1 + $0x390] sm:$0xff]
  %v306 = vld [vmem:[%s1 + $0x398] sm:$0xff]
  %v307 = vld [vmem:[%s1 + $0x3a0] sm:$0xff]
  %v308 = vld [vmem:[%s1 + $0x3a8] sm:$0xff]
  %v309 = vld [vmem:[%s1 + $0x3b0] sm:$0xff]
  %v310 = vld [vmem:[%s1 + $0x3b8] sm:$0xff]
  %v311 = vld [vmem:[%s1 + $0x3c0] sm:$0xff]
  %v312 = vld [vmem:[%s1 + $0x3c8] sm:$0xff]
  %v313 = vld [vmem:[%s1 + $0x3d0] sm:$0xff]
  %v314 = vld [vmem:[%s1 + $0x3d8] sm:$0xff]
  %v315 = vld [vmem:[%s1 + $0x3e0] sm:$0xff]
  %v316 = vld [vmem:[%s1 + $0x3e8] sm:$0xff]
  %v317 = vld [vmem:[%s1 + $0x3f0] sm:$0xff]
  %v318 = vld [vmem:[%s1 + $0x3f8] sm:$0xff]
  %v319 = vld [vmem:[%s1 + $0x400] sm:$0xff]
  %v320 = vld [vmem:[%s1 + $0x408] sm:$0xff]
  %v321 = vld [vmem:[%s1 + $0x410] sm:$0xff]
  %v322 = vld [vmem:[%s1 + $0x418] sm:$0xff]
  %v323 = vld [vmem:[%s1 + $0x420] sm:$0xff]
  %v324 = vld [vmem:[%s1 + $0x428] sm:$0xff]
  %v325 = vld [vmem:[%s1 + $0x430] sm:$0xff]
  %v326 = vld [vmem:[%s1 + $0x438] sm:$0xff]
  %v327 = vld [vmem:[%s1 + $0x440] sm:$0xff]
  %v328 = vld [vmem:[%s1 + $0x448] sm:$0xff]
  %v329 = vld [vmem:[%s1 + $0x450] sm:$0xff]
  %v330 = vld [vmem:[%s1 + $0x458] sm:$0xff]
  %v331 = vld [vmem:[%s1 + $0x460] sm:$0xff]
  %v332 = vld [vmem:[%s1 + $0x468] sm:$0xff]
  %v333 = vld [vmem:[%s1 + $0x470] sm:$0xff]
  %v334 = vld [vmem:[%s1 + $0x478] sm:$0xff]
  %v335 = vld [vmem:[%s1 + $0x480] sm:$0xff]
  %v336 = vld [vmem:[%s1 + $0x488] sm:$0xff]
  %v337 = vld [vmem:[%s1 + $0x490] sm:$0xff]
  %v338 = vld [vmem:[%s1 + $0x498] sm:$0xff]
  %v339 = vld [vmem:[%s1 + $0x4a0] sm:$0xff]
  %v340 = vld [vmem:[%s1 + $0x4a8] sm:$0xff]
  %v341 = vld [vmem:[%s1 + $0x4b0] sm:$0xff]
  %v342 = vld [vmem:[%s1 + $0x4b8] sm:$0xff]
  %v343 = vld [vmem:[%s1 + $0x4c0] sm:$0xff]
  %v344 = vld [vmem:[%s1 + $0x4c8] sm:$0xff]
  %v345 = vld [vmem:[%s1 + $0x4d0] sm:$0xff]
  %v346 = vld [vmem:[%s1 + $0x4d8] sm:$0xff]
  %v347 = vld [vmem:[%s1 + $0x4e0] sm:$0xff]
  %v348 = vld [vmem:[%s1 + $0x4e8] sm:$0xff]
  %v349 = vld [vmem:[%s1 + $0x4f0] sm:$0xff]
  %v350 = vld [vmem:[%s1 + $0x4f8] sm:$0xff]
  %v351 = vld [vmem:[%s1 + $0x500] sm:$0xff]
  %v352 = vld [vmem:[%s1 + $0x508] sm:$0xff]
  %v353 = vld [vmem:[%s1 + $0x510] sm:$0xff]
  %v354 = vld [vmem:[%s1 + $0x518] sm:$0xff]
  %v355 = vld [vmem:[%s1 + $0x520] sm:$0xff]
  %v356 = vld [vmem:[%s1 + $0x528] sm:$0xff]
  %v357 = vld [vmem:[%s1 + $0x530] sm:$0xff]
  %v358 = vld [vmem:[%s1 + $0x538] sm:$0xff]
  %v359 = vld [vmem:[%s1 + $0x540] sm:$0xff]
  %v360 = vld [vmem:[%s1 + $0x548] sm:$0xff]
  %v361 = vld [vmem:[%s1 + $0x550] sm:$0xff]
  %v362 = vld [vmem:[%s1 + $0x558] sm:$0xff]
  %v363 = vld [vmem:[%s1 + $0x560] sm:$0xff]
  %v364 = vld [vmem:[%s1 + $0x568] sm:$0xff]
  %v365 = vld [vmem:[%s1 + $0x570] sm:$0xff]
  %v366 = vld [vmem:[%s1 + $0x578] sm:$0xff]
  %v367 = vld [vmem:[%s1 + $0x580] sm:$0xff]
  %v368 = vld [vmem:[%s1 + $0x588] sm:$0xff]
  %v369 = vld [vmem:[%s1 + $0x590] sm:$0xff]
  %v370 = vld [vmem:[%s1 + $0x598] sm:$0xff]
  %v371 = vadd.f32 %v11, %v191
  %v372 = vadd.f32 %v12, %v192
  %v373 = vadd.f32 %v13, %v193
  %v374 = vadd.f32 %v14, %v194
  %v375 = vadd.f32 %v15, %v195
  %v376 = vadd.f32 %v16, %v196
  %v377 = vadd.f32 %v17, %v197
  %v378 = vadd.f32 %v18, %v198
  %v379 = vadd.f32 %v19, %v199
  %v380 = vadd.f32 %v20, %v200
  %v381 = vadd.f32 %v21, %v201
  %v382 = vadd.f32 %v22, %v202
  %v383 = vadd.f32 %v23, %v203
  %v384 = vadd.f32 %v24, %v204
  %v385 = vadd.f32 %v25, %v205
  %v386 = vadd.f32 %v26, %v206
  %v387 = vadd.f32 %v27, %v207
  %v388 = vadd.f32 %v28, %v208
  %v389 = vadd.f32 %v29, %v209
  %v390 = vadd.f32 %v30, %v210
  %v391 = vadd.f32 %v31, %v211
  %v392 = vadd.f32 %v32, %v212
  %v393 = vadd.f32 %v33, %v213
  %v394 = vadd.f32 %v34, %v214
  %v395 = vadd.f32 %v35, %v215
  %v396 = vadd.f32 %v36, %v216
  %v397 = vadd.f32 %v37, %v217
  %v398 = vadd.f32 %v38, %v218
  %v399 = vadd.f32 %v39, %v219
  %v400 = vadd.f32 %v40, %v220
  %v401 = vadd.f32 %v41, %v221
  %v402 = vadd.f32 %v42, %v222
  %v403 = vadd.f32 %v43, %v223
  %v404 = vadd.f32 %v44, %v224
  %v405 = vadd.f32 %v45, %v225
  %v406 = vadd.f32 %v46, %v226
  %v407 = vadd.f32 %v47, %v227
  %v408 = vadd.f32 %v48, %v228
  %v409 = vadd.f32 %v49, %v229
  %v410 = vadd.f32 %v50, %v230
  %v411 = vadd.f32 %v51, %v231
  %v412 = vadd.f32 %v52, %v232
  %v413 = vadd.f32 %v53, %v233
  %v414 = vadd.f32 %v54, %v234
  %v415 = vadd.f32 %v55, %v235
  %v416 = vadd.f32 %v56, %v236
  %v417 = vadd.f32 %v57, %v237
  %v418 = vadd.f32 %v58, %v238
  %v419 = vadd.f32 %v59, %v239
  %v420 = vadd.f32 %v60, %v240
  %v421 = vadd.f32 %v61, %v241
  %v422 = vadd.f32 %v62, %v242
  %v423 = vadd.f32 %v63, %v243
  %v424 = vadd.f32 %v64, %v244
  %v425 = vadd.f32 %v65, %v245
  %v426 = vadd.f32 %v66, %v246
  %v427 = vadd.f32 %v67, %v247
  %v428 = vadd.f32 %v68, %v248
  %v429 = vadd.f32 %v69, %v249
  %v430 = vadd.f32 %v70, %v250
  %v431 = vadd.f32 %v71, %v251
  %v432 = vadd.f32 %v72, %v252
  %v433 = vadd.f32 %v73, %v253
  %v434 = vadd.f32 %v74, %v254
  %v435 = vadd.f32 %v75, %v255
  %v436 = vadd.f32 %v76, %v256
  %v437 = vadd.f32 %v77, %v257
  %v438 = vadd.f32 %v78, %v258
  %v439 = vadd.f32 %v79, %v259
  %v440 = vadd.f32 %v80, %v260
  %v441 = vadd.f32 %v81, %v261
  %v442 = vadd.f32 %v82, %v262
  %v443 = vadd.f32 %v83, %v263
  %v444 = vadd.f32 %v84, %v264
  %v445 = vadd.f32 %v85, %v265
  %v446 = vadd.f32 %v86, %v266
  %v447 = vadd.f32 %v87, %v267
  %v448 = vadd.f32 %v88, %v268
  %v449 = vadd.f32 %v89, %v269
  %v450 = vadd.f32 %v90, %v270
  %v451 = vadd.f32 %v91, %v271
  %v452 = vadd.f32 %v92, %v272
  %v453 = vadd.f32 %v93, %v273
  %v454 = vadd.f32 %v94, %v274
  %v455 = vadd.f32 %v95, %v275
  %v456 = vadd.f32 %v96, %v276
  %v457 = vadd.f32 %v97, %v277
  %v458 = vadd.f32 %v98, %v278
  %v459 = vadd.f32 %v99, %v279
  %v460 = vadd.f32 %v100, %v280
  %v461 = vadd.f32 %v101, %v281
  %v462 = vadd.f32 %v102, %v282
  %v463 = vadd.f32 %v103, %v283
  %v464 = vadd.f32 %v104, %v284
  %v465 = vadd.f32 %v105, %v285
  %v466 = vadd.f32 %v106, %v286
  %v467 = vadd.f32 %v107, %v287
  %v468 = vadd.f32 %v108, %v288
  %v469 = vadd.f32 %v109, %v289
  %v470 = vadd.f32 %v110, %v290
  %v471 = vadd.f32 %v111, %v291
  %v472 = vadd.f32 %v112, %v292
  %v473 = vadd.f32 %v113, %v293
  %v474 = vadd.f32 %v114, %v294
  %v475 = vadd.f32 %v115, %v295
  %v476 = vadd.f32 %v116, %v296
  %v477 = vadd.f32 %v117, %v297
  %v478 = vadd.f32 %v118, %v298
  %v479 = vadd.f32 %v119, %v299
  %v480 = vadd.f32 %v120, %v300
  %v481 = vadd.f32 %v121, %v301
  %v482 = vadd.f32 %v122, %v302
  %v483 = vadd.f32 %v123, %v303
  %v484 = vadd.f32 %v124, %v304
  %v485 = vadd.f32 %v125, %v305
  %v486 = vadd.f32 %v126, %v306
  %v487 = vadd.f32 %v127, %v307
  %v488 = vadd.f32 %v128, %v308
  %v489 = vadd.f32 %v129, %v309
  %v490 = vadd.f32 %v130, %v310
  %v491 = vadd.f32 %v131, %v311
  %v492 = vadd.f32 %v132, %v312
  %v493 = vadd.f32 %v133, %v313
  %v494 = vadd.f32 %v134, %v314
  %v495 = vadd.f32 %v135, %v315
  %v496 = vadd.f32 %v136, %v316
  %v497 = vadd.f32 %v137, %v317
  %v498 = vadd.f32 %v138, %v318
  %v499 = vadd.f32 %v139, %v319
  %v500 = vadd.f32 %v140, %v320
  %v501 = vadd.f32 %v141, %v321
  %v502 = vadd.f32 %v142, %v322
  %v503 = vadd.f32 %v143, %v323
  %v504 = vadd.f32 %v144, %v324
  %v505 = vadd.f32 %v145, %v325
  %v506 = vadd.f32 %v146, %v326
  %v507 = vadd.f32 %v147, %v327
  %v508 = vadd.f32 %v148, %v328
  %v509 = vadd.f32 %v149, %v329
  %v510 = vadd.f32 %v150, %v330
  %v511 = vadd.f32 %v151, %v331
  %v512 = vadd.f32 %v152, %v332
  %v513 = vadd.f32 %v153, %v333
  %v514 = vadd.f32 %v154, %v334
  %v515 = vadd.f32 %v155, %v335
  %v516 = vadd.f32 %v156, %v336
  %v517 = vadd.f32 %v157, %v337
  %v518 = vadd.f32 %v158, %v338
  %v519 = vadd.f32 %v159, %v339
  %v520 = vadd.f32 %v160, %v340
  %v521 = vadd.f32 %v161, %v341
  %v522 = vadd.f32 %v162, %v342
  %v523 = vadd.f32 %v163, %v343
  %v524 = vadd.f32 %v164, %v344
  %v525 = vadd.f32 %v165, %v345
  %v526 = vadd.f32 %v166, %v346
  %v527 = vadd.f32 %v167, %v347
  %v528 = vadd.f32 %v168, %v348
  %v529 = vadd.f32 %v169, %v349
  %v530 = vadd.f32 %v170, %v350
  %v531 = vadd.f32 %v171, %v351
  %v532 = vadd.f32 %v172, %v352
  %v533 = vadd.f32 %v173, %v353
  %v534 = vadd.f32 %v174, %v354
  %v535 = vadd.f32 %v175, %v355
  %v536 = vadd.f32 %v176, %v356
  %v537 = vadd.f32 %v177, %v357
  %v538 = vadd.f32 %v178, %v358
  %v539 = vadd.f32 %v179, %v359
  %v540 = vadd.f32 %v180, %v360
  %v541 = vadd.f32 %v181, %v361
  %v542 = vadd.f32 %v182, %v362
  %v543 = vadd.f32 %v183, %v363
  %v544 = vadd.f32 %v184, %v364
  %v545 = vadd.f32 %v185, %v365
  %v546 = vadd.f32 %v186, %v366
  %v547 = vadd.f32 %v187, %v367
  %v548 = vadd.f32 %v188, %v368
  %v549 = vadd.f32 %v189, %v369
  %v550 = vadd.f32 %v190, %v370
  %551 = vst [vmem:[%s2] sm:$0xff] %v371
  %vm552 = vcmask 556032
  %553 = vst.msk [vmem:[%s2 + $0x8] sm:$0xff] %vm552, %v372
  %554 = vst [vmem:[%s2 + $0x10] sm:$0xff] %v373
  %555 = vst.msk [vmem:[%s2 + $0x18] sm:$0xff] %vm552, %v374
  %556 = vst [vmem:[%s2 + $0x20] sm:$0xff] %v375
  %557 = vst.msk [vmem:[%s2 + $0x28] sm:$0xff] %vm552, %v376
  %558 = vst [vmem:[%s2 + $0x30] sm:$0xff] %v377
  %559 = vst.msk [vmem:[%s2 + $0x38] sm:$0xff] %vm552, %v378
  %560 = vst [vmem:[%s2 + $0x40] sm:$0xff] %v379
  %561 = vst.msk [vmem:[%s2 + $0x48] sm:$0xff] %vm552, %v380
  %562 = vst [vmem:[%s2 + $0x50] sm:$0xff] %v381
  %563 = vst.msk [vmem:[%s2 + $0x58] sm:$0xff] %vm552, %v382
  %564 = vst [vmem:[%s2 + $0x60] sm:$0xff] %v383
  %565 = vst.msk [vmem:[%s2 + $0x68] sm:$0xff] %vm552, %v384
  %566 = vst [vmem:[%s2 + $0x70] sm:$0xff] %v385
  %567 = vst.msk [vmem:[%s2 + $0x78] sm:$0xff] %vm552, %v386
  %568 = vst [vmem:[%s2 + $0x80] sm:$0xff] %v387
  %569 = vst.msk [vmem:[%s2 + $0x88] sm:$0xff] %vm552, %v388
  %570 = vst [vmem:[%s2 + $0x90] sm:$0xff] %v389
  %571 = vst.msk [vmem:[%s2 + $0x98] sm:$0xff] %vm552, %v390
  %572 = vst [vmem:[%s2 + $0xa0] sm:$0xff] %v391
  %573 = vst.msk [vmem:[%s2 + $0xa8] sm:$0xff] %vm552, %v392
  %574 = vst [vmem:[%s2 + $0xb0] sm:$0xff] %v393
  %575 = vst.msk [vmem:[%s2 + $0xb8] sm:$0xff] %vm552, %v394
  %576 = vst [vmem:[%s2 + $0xc0] sm:$0xff] %v395
  %577 = vst.msk [vmem:[%s2 + $0xc8] sm:$0xff] %vm552, %v396
  %578 = vst [vmem:[%s2 + $0xd0] sm:$0xff] %v397
  %579 = vst.msk [vmem:[%s2 + $0xd8] sm:$0xff] %vm552, %v398
  %580 = vst [vmem:[%s2 + $0xe0] sm:$0xff] %v399
  %581 = vst.msk [vmem:[%s2 + $0xe8] sm:$0xff] %vm552, %v400
  %582 = vst [vmem:[%s2 + $0xf0] sm:$0xff] %v401
  %583 = vst.msk [vmem:[%s2 + $0xf8] sm:$0xff] %vm552, %v402
  %584 = vst [vmem:[%s2 + $0x100] sm:$0xff] %v403
  %585 = vst.msk [vmem:[%s2 + $0x108] sm:$0xff] %vm552, %v404
  %586 = vst [vmem:[%s2 + $0x110] sm:$0xff] %v405
  %587 = vst.msk [vmem:[%s2 + $0x118] sm:$0xff] %vm552, %v406
  %588 = vst [vmem:[%s2 + $0x120] sm:$0xff] %v407
  %589 = vst.msk [vmem:[%s2 + $0x128] sm:$0xff] %vm552, %v408
  %590 = vst [vmem:[%s2 + $0x130] sm:$0xff] %v409
  %591 = vst.msk [vmem:[%s2 + $0x138] sm:$0xff] %vm552, %v410
  %592 = vst [vmem:[%s2 + $0x140] sm:$0xff] %v411
  %593 = vst.msk [vmem:[%s2 + $0x148] sm:$0xff] %vm552, %v412
  %594 = vst [vmem:[%s2 + $0x150] sm:$0xff] %v413
  %595 = vst.msk [vmem:[%s2 + $0x158] sm:$0xff] %vm552, %v414
  %596 = vst [vmem:[%s2 + $0x160] sm:$0xff] %v415
  %597 = vst.msk [vmem:[%s2 + $0x168] sm:$0xff] %vm552, %v416
  %598 = vst [vmem:[%s2 + $0x170] sm:$0xff] %v417
  %599 = vst.msk [vmem:[%s2 + $0x178] sm:$0xff] %vm552, %v418
  %600 = vst [vmem:[%s2 + $0x180] sm:$0xff] %v419
  %601 = vst.msk [vmem:[%s2 + $0x188] sm:$0xff] %vm552, %v420
  %602 = vst [vmem:[%s2 + $0x190] sm:$0xff] %v421
  %603 = vst.msk [vmem:[%s2 + $0x198] sm:$0xff] %vm552, %v422
  %604 = vst [vmem:[%s2 + $0x1a0] sm:$0xff] %v423
  %605 = vst.msk [vmem:[%s2 + $0x1a8] sm:$0xff] %vm552, %v424
  %606 = vst [vmem:[%s2 + $0x1b0] sm:$0xff] %v425
  %607 = vst.msk [vmem:[%s2 + $0x1b8] sm:$0xff] %vm552, %v426
  %608 = vst [vmem:[%s2 + $0x1c0] sm:$0xff] %v427
  %609 = vst.msk [vmem:[%s2 + $0x1c8] sm:$0xff] %vm552, %v428
  %610 = vst [vmem:[%s2 + $0x1d0] sm:$0xff] %v429
  %611 = vst.msk [vmem:[%s2 + $0x1d8] sm:$0xff] %vm552, %v430
  %612 = vst [vmem:[%s2 + $0x1e0] sm:$0xff] %v431
  %613 = vst.msk [vmem:[%s2 + $0x1e8] sm:$0xff] %vm552, %v432
  %614 = vst [vmem:[%s2 + $0x1f0] sm:$0xff] %v433
  %615 = vst.msk [vmem:[%s2 + $0x1f8] sm:$0xff] %vm552, %v434
  %616 = vst [vmem:[%s2 + $0x200] sm:$0xff] %v435
  %617 = vst.msk [vmem:[%s2 + $0x208] sm:$0xff] %vm552, %v436
  %618 = vst [vmem:[%s2 + $0x210] sm:$0xff] %v437
  %619 = vst.msk [vmem:[%s2 + $0x218] sm:$0xff] %vm552, %v438
  %620 = vst [vmem:[%s2 + $0x220] sm:$0xff] %v439
  %621 = vst.msk [vmem:[%s2 + $0x228] sm:$0xff] %vm552, %v440
  %622 = vst [vmem:[%s2 + $0x230] sm:$0xff] %v441
  %623 = vst.msk [vmem:[%s2 + $0x238] sm:$0xff] %vm552, %v442
  %624 = vst [vmem:[%s2 + $0x240] sm:$0xff] %v443
  %625 = vst.msk [vmem:[%s2 + $0x248] sm:$0xff] %vm552, %v444
  %626 = vst [vmem:[%s2 + $0x250] sm:$0xff] %v445
  %627 = vst.msk [vmem:[%s2 + $0x258] sm:$0xff] %vm552, %v446
  %628 = vst [vmem:[%s2 + $0x260] sm:$0xff] %v447
  %629 = vst.msk [vmem:[%s2 + $0x268] sm:$0xff] %vm552, %v448
  %630 = vst [vmem:[%s2 + $0x270] sm:$0xff] %v449
  %631 = vst.msk [vmem:[%s2 + $0x278] sm:$0xff] %vm552, %v450
  %632 = vst [vmem:[%s2 + $0x280] sm:$0xff] %v451
  %633 = vst.msk [vmem:[%s2 + $0x288] sm:$0xff] %vm552, %v452
  %634 = vst [vmem:[%s2 + $0x290] sm:$0xff] %v453
  %635 = vst.msk [vmem:[%s2 + $0x298] sm:$0xff] %vm552, %v454
  %636 = vst [vmem:[%s2 + $0x2a0] sm:$0xff] %v455
  %637 = vst.msk [vmem:[%s2 + $0x2a8] sm:$0xff] %vm552, %v456
  %638 = vst [vmem:[%s2 + $0x2b0] sm:$0xff] %v457
  %639 = vst.msk [vmem:[%s2 + $0x2b8] sm:$0xff] %vm552, %v458
  %640 = vst [vmem:[%s2 + $0x2c0] sm:$0xff] %v459
  %641 = vst.msk [vmem:[%s2 + $0x2c8] sm:$0xff] %vm552, %v460
  %642 = vst [vmem:[%s2 + $0x2d0] sm:$0xff] %v461
  %643 = vst.msk [vmem:[%s2 + $0x2d8] sm:$0xff] %vm552, %v462
  %644 = vst [vmem:[%s2 + $0x2e0] sm:$0xff] %v463
  %645 = vst.msk [vmem:[%s2 + $0x2e8] sm:$0xff] %vm552, %v464
  %646 = vst [vmem:[%s2 + $0x2f0] sm:$0xff] %v465
  %647 = vst.msk [vmem:[%s2 + $0x2f8] sm:$0xff] %vm552, %v466
  %648 = vst [vmem:[%s2 + $0x300] sm:$0xff] %v467
  %649 = vst.msk [vmem:[%s2 + $0x308] sm:$0xff] %vm552, %v468
  %650 = vst [vmem:[%s2 + $0x310] sm:$0xff] %v469
  %651 = vst.msk [vmem:[%s2 + $0x318] sm:$0xff] %vm552, %v470
  %652 = vst [vmem:[%s2 + $0x320] sm:$0xff] %v471
  %653 = vst.msk [vmem:[%s2 + $0x328] sm:$0xff] %vm552, %v472
  %654 = vst [vmem:[%s2 + $0x330] sm:$0xff] %v473
  %655 = vst.msk [vmem:[%s2 + $0x338] sm:$0xff] %vm552, %v474
  %656 = vst [vmem:[%s2 + $0x340] sm:$0xff] %v475
  %657 = vst.msk [vmem:[%s2 + $0x348] sm:$0xff] %vm552, %v476
  %658 = vst [vmem:[%s2 + $0x350] sm:$0xff] %v477
  %659 = vst.msk [vmem:[%s2 + $0x358] sm:$0xff] %vm552, %v478
  %660 = vst [vmem:[%s2 + $0x360] sm:$0xff] %v479
  %661 = vst.msk [vmem:[%s2 + $0x368] sm:$0xff] %vm552, %v480
  %662 = vst [vmem:[%s2 + $0x370] sm:$0xff] %v481
  %663 = vst.msk [vmem:[%s2 + $0x378] sm:$0xff] %vm552, %v482
  %664 = vst [vmem:[%s2 + $0x380] sm:$0xff] %v483
  %665 = vst.msk [vmem:[%s2 + $0x388] sm:$0xff] %vm552, %v484
  %666 = vst [vmem:[%s2 + $0x390] sm:$0xff] %v485
  %667 = vst.msk [vmem:[%s2 + $0x398] sm:$0xff] %vm552, %v486
  %668 = vst [vmem:[%s2 + $0x3a0] sm:$0xff] %v487
  %669 = vst.msk [vmem:[%s2 + $0x3a8] sm:$0xff] %vm552, %v488
  %670 = vst [vmem:[%s2 + $0x3b0] sm:$0xff] %v489
  %671 = vst.msk [vmem:[%s2 + $0x3b8] sm:$0xff] %vm552, %v490
  %672 = vst [vmem:[%s2 + $0x3c0] sm:$0xff] %v491
  %673 = vst.msk [vmem:[%s2 + $0x3c8] sm:$0xff] %vm552, %v492
  %674 = vst [vmem:[%s2 + $0x3d0] sm:$0xff] %v493
  %675 = vst.msk [vmem:[%s2 + $0x3d8] sm:$0xff] %vm552, %v494
  %676 = vst [vmem:[%s2 + $0x3e0] sm:$0xff] %v495
  %677 = vst.msk [vmem:[%s2 + $0x3e8] sm:$0xff] %vm552, %v496
  %678 = vst [vmem:[%s2 + $0x3f0] sm:$0xff] %v497
  %679 = vst.msk [vmem:[%s2 + $0x3f8] sm:$0xff] %vm552, %v498
  %680 = vst [vmem:[%s2 + $0x400] sm:$0xff] %v499
  %681 = vst.msk [vmem:[%s2 + $0x408] sm:$0xff] %vm552, %v500
  %682 = vst [vmem:[%s2 + $0x410] sm:$0xff] %v501
  %683 = vst.msk [vmem:[%s2 + $0x418] sm:$0xff] %vm552, %v502
  %684 = vst [vmem:[%s2 + $0x420] sm:$0xff] %v503
  %685 = vst.msk [vmem:[%s2 + $0x428] sm:$0xff] %vm552, %v504
  %686 = vst [vmem:[%s2 + $0x430] sm:$0xff] %v505
  %687 = vst.msk [vmem:[%s2 + $0x438] sm:$0xff] %vm552, %v506
  %688 = vst [vmem:[%s2 + $0x440] sm:$0xff] %v507
  %689 = vst.msk [vmem:[%s2 + $0x448] sm:$0xff] %vm552, %v508
  %690 = vst [vmem:[%s2 + $0x450] sm:$0xff] %v509
  %691 = vst.msk [vmem:[%s2 + $0x458] sm:$0xff] %vm552, %v510
  %692 = vst [vmem:[%s2 + $0x460] sm:$0xff] %v511
  %693 = vst.msk [vmem:[%s2 + $0x468] sm:$0xff] %vm552, %v512
  %694 = vst [vmem:[%s2 + $0x470] sm:$0xff] %v513
  %695 = vst.msk [vmem:[%s2 + $0x478] sm:$0xff] %vm552, %v514
  %696 = vst [vmem:[%s2 + $0x480] sm:$0xff] %v515
  %697 = vst.msk [vmem:[%s2 + $0x488] sm:$0xff] %vm552, %v516
  %698 = vst [vmem:[%s2 + $0x490] sm:$0xff] %v517
  %699 = vst.msk [vmem:[%s2 + $0x498] sm:$0xff] %vm552, %v518
  %700 = vst [vmem:[%s2 + $0x4a0] sm:$0xff] %v519
  %701 = vst.msk [vmem:[%s2 + $0x4a8] sm:$0xff] %vm552, %v520
  %702 = vst [vmem:[%s2 + $0x4b0] sm:$0xff] %v521
  %703 = vst.msk [vmem:[%s2 + $0x4b8] sm:$0xff] %vm552, %v522
  %704 = vst [vmem:[%s2 + $0x4c0] sm:$0xff] %v523
  %705 = vst.msk [vmem:[%s2 + $0x4c8] sm:$0xff] %vm552, %v524
  %706 = vst [vmem:[%s2 + $0x4d0] sm:$0xff] %v525
  %707 = vst.msk [vmem:[%s2 + $0x4d8] sm:$0xff] %vm552, %v526
  %708 = vst [vmem:[%s2 + $0x4e0] sm:$0xff] %v527
  %709 = vst.msk [vmem:[%s2 + $0x4e8] sm:$0xff] %vm552, %v528
  %710 = vst [vmem:[%s2 + $0x4f0] sm:$0xff] %v529
  %711 = vst.msk [vmem:[%s2 + $0x4f8] sm:$0xff] %vm552, %v530
  %712 = vst [vmem:[%s2 + $0x500] sm:$0xff] %v531
  %713 = vst.msk [vmem:[%s2 + $0x508] sm:$0xff] %vm552, %v532
  %714 = vst [vmem:[%s2 + $0x510] sm:$0xff] %v533
  %715 = vst.msk [vmem:[%s2 + $0x518] sm:$0xff] %vm552, %v534
  %716 = vst [vmem:[%s2 + $0x520] sm:$0xff] %v535
  %717 = vst.msk [vmem:[%s2 + $0x528] sm:$0xff] %vm552, %v536
  %718 = vst [vmem:[%s2 + $0x530] sm:$0xff] %v537
  %719 = vst.msk [vmem:[%s2 + $0x538] sm:$0xff] %vm552, %v538
  %720 = vst [vmem:[%s2 + $0x540] sm:$0xff] %v539
  %721 = vst.msk [vmem:[%s2 + $0x548] sm:$0xff] %vm552, %v540
  %722 = vst [vmem:[%s2 + $0x550] sm:$0xff] %v541
  %723 = vst.msk [vmem:[%s2 + $0x558] sm:$0xff] %vm552, %v542
  %724 = vst [vmem:[%s2 + $0x560] sm:$0xff] %v543
  %725 = vst.msk [vmem:[%s2 + $0x568] sm:$0xff] %vm552, %v544
  %726 = vst [vmem:[%s2 + $0x570] sm:$0xff] %v545
  %727 = vst.msk [vmem:[%s2 + $0x578] sm:$0xff] %vm552, %v546
  %728 = vst [vmem:[%s2 + $0x580] sm:$0xff] %v547
  %729 = vst.msk [vmem:[%s2 + $0x588] sm:$0xff] %vm552, %v548
  %730 = vst [vmem:[%s2 + $0x590] sm:$0xff] %v549
  %731 = vst.msk [vmem:[%s2 + $0x598] sm:$0xff] %vm552, %v550
  // Predicated region
  $region10: #{pallas_add.1} parent=0 // pred_check
    _
  $region11: #{pallas_add.1} parent=0 // pred_check_branch
    %733 = sbr.rel (0) target = $region13
  $region12: #{pallas_add.1} parent=0 // pred_region
    _
  $region13: #{pallas_add.1} parent=0 // pred_fallthru
    _
  // Predicated region
  $region14: #{pallas_add.1} parent=0 // pred_check
    _
  $region15: #{pallas_add.1} parent=0 // pred_check_branch
    %735 = sbr.rel (0) target = $region17
  $region16: #{pallas_add.1} parent=0 // pred_region
    _
  $region17: #{pallas_add.1} parent=0 // pred_fallthru
    _

</llo_original>
